<compile_context>
chip_gen: v7x
topology: tpu7x:2x2x1
jax: 0.10.0
libtpu: 0.0.40
codegen_flags: <defaults>
</compile_context>

<pallas_src>
import math
from functools import partial

import jax
import jax.numpy as jnp
import numpy as np
from jax.experimental import pallas as pl
from jax.experimental.pallas import tpu as pltpu

# ---- static problem sizes (from the PyTorch module) -------------------------
N = 5            # batch
C = 24           # output channels of the transposed conv
IH, IW = 2, 6    # input spatial
OH, OW = 4, 16   # transposed-conv output spatial: (I-1)*3 - 2*1 + 3
PH, PW = 2, 6    # avg-pool output spatial
POOL_K, POOL_S, POOL_P = 3, 3, 2

# ---- TPU-friendly padded sizes ----------------------------------------------
N_PAD = 8                    # pad batch 5 -> 8 (sublane multiple)
K_IN = IH * IW               # 12 input "features" per batch element
K_EFF = K_IN + 1             # + ones column carrying the bias
K_PAD = 16                   # pad contraction dim to the f32 sublane multiple (8)
C_PAD = 32                   # pad channels 24 -> 32 so C_PAD*PH*PW = 384 = 3*128
OUT_F = C_PAD * PH * PW      # 384, lane-dense output width, ordered (c, ph, pw)


def _build_scatter_table():
    """Static (data- and weight-independent) mapping tables.

    A[(i*IW+j), (ph*PW+pw), (ki*3+kj)] = 1/9 if the intermediate pixel produced by
    input (i,j) with kernel tap (ki,kj) falls inside pool window (ph,pw), else 0.
    scale[(ph,pw)] = (# valid pixels in that window) / 9   (for the bias term).
    """
    A = np.zeros((K_IN, PH * PW, 9), np.float32)
    scale = np.zeros((PH * PW,), np.float32)
    inv_area = 1.0 / float(POOL_K * POOL_K)
    for ph in range(PH):
        for pw in range(PW):
            p = ph * PW + pw
            for dh in range(POOL_K):
                oh = ph * POOL_S - POOL_P + dh
                if not (0 <= oh < OH):
                    continue
                for dw in range(POOL_K):
                    ow = pw * POOL_S - POOL_P + dw
                    if not (0 <= ow < OW):
                        continue
                    i, ki = divmod(oh + 1, 3)
                    j, kj = divmod(ow + 1, 3)
                    A[i * IW + j, p, ki * 3 + kj] += inv_area
                    scale[p] += inv_area
    return A, scale


_A_NP, _SCALE_NP = _build_scatter_table()


def build_fused_table(weight, bias):
    """Weight-derived table T: f32[K_PAD, OUT_F], channel-major (c, ph, pw).

    Row k<12  : contribution of flattened input pixel k.
    Row 12    : bias term (scaled by valid_count/9 per pool position).
    Rows 13-15: zero padding (inert).
    Hoist this out of the per-call path; weights are fixed at inference time.
    """
    A = jnp.asarray(_A_NP)                      # (12, PH*PW, 9)
    scale = jnp.asarray(_SCALE_NP)              # (PH*PW,)

    w_k = jnp.transpose(weight[0], (1, 2, 0)).reshape(9, C).astype(jnp.float32)  # (9, 24)
    w_pad = jnp.pad(w_k, ((0, 0), (0, C_PAD - C)))                               # (9, 32)
    b_pad = jnp.pad(bias.astype(jnp.float32), (0, C_PAD - C))                    # (32,)

    # T[(i,j), (c,ph,pw)] = (1/9) * sum over in-window taps of W[ki,kj,c]
    T_x = jnp.einsum("xpk,kc->xcp", A, w_pad).reshape(K_IN, OUT_F)               # (12, 384)
    # Bias row: B[(c,ph,pw)] = (valid_count/9) * bias[c]
    B_row = (b_pad[:, None] * scale[None, :]).reshape(1, OUT_F)                  # (1, 384)

    T = jnp.concatenate([T_x, B_row], axis=0)                                    # (13, 384)
    T = jnp.pad(T, ((0, K_PAD - K_EFF), (0, 0)))                                 # (16, 384)
    return T


def _fused_kernel(x_ref, t_ref, o_ref):
    """x_ref: VMEM f32[N_PAD, K_PAD]; t_ref: VMEM f32[K_PAD, OUT_F];
    o_ref: VMEM f32[N_PAD, OUT_F].

    A single MXU matmul; one full-block lane-dense (8, 384) unmasked store.
    """
    o_ref[...] = jnp.dot(x_ref[...], t_ref[...], preferred_element_type=jnp.float32)


@jax.jit
def model_forward_with_table(x_nchw, T):
    """x_nchw: (N,1,IH,IW) f32; T: (K_PAD, OUT_F) f32 -> (N, C, PH, PW)."""
    # Flatten x, append the ones column (bias carrier), zero-pad to (8, 16).
    x_mat = x_nchw.reshape(N, K_IN).astype(jnp.float32)                          # (5, 12)
    x_mat = jnp.concatenate([x_mat, jnp.ones((N, 1), jnp.float32)], axis=1)      # (5, 13)
    x_mat = jnp.pad(x_mat, ((0, N_PAD - N), (0, K_PAD - K_EFF)))                 # (8, 16)

    out_flat = pl.pallas_call(
        _fused_kernel,
        out_shape=jax.ShapeDtypeStruct((N_PAD, OUT_F), jnp.float32),
        in_specs=[
            pl.BlockSpec(memory_space=pltpu.MemorySpace.VMEM),  # x_mat
            pl.BlockSpec(memory_space=pltpu.MemorySpace.VMEM),  # T
        ],
        out_specs=pl.BlockSpec(memory_space=pltpu.MemorySpace.VMEM),
        cost_estimate=pl.CostEstimate(
            flops=2 * N_PAD * K_PAD * OUT_F,
            transcendentals=0,
            bytes_accessed=(N_PAD * K_PAD + K_PAD * OUT_F + N_PAD * OUT_F) * 4,
        ),
    )(x_mat, T)

    # Channel-major output: unpad + reshape only (no transpose).
    out = out_flat[:N].reshape(N, C_PAD, PH, PW)[:, :C]                          # (N, C, PH, PW)
    return out


def model_forward(x_nchw, weight, bias):
    """Full forward from raw parameters (table built on the fly)."""
    T = build_fused_table(weight, bias)
    return model_forward_with_table(x_nchw, T)


def _reference_forward(x, W, b):
    """Straightforward numpy reference of the same semantics (sanity check)."""
    x = np.asarray(x, np.float32)
    W = np.asarray(W, np.float32)
    b = np.asarray(b, np.float32)
    v1 = np.zeros((N, C, OH, OW), np.float32)
    for n in range(N):
        for c in range(C):
            for oh in range(OH):
                i, ki = divmod(oh + 1, 3)
                for ow in range(OW):
                    j, kj = divmod(ow + 1, 3)
                    v1[n, c, oh, ow] = x[n, 0, i, j] * W[0, c, ki, kj] + b[c]
    out = np.zeros((N, C, PH, PW), np.float32)
    for ph in range(PH):
        for pw in range(PW):
            acc = np.zeros((N, C), np.float32)
            for dh in range(POOL_K):
                oh = ph * POOL_S - POOL_P + dh
                if not (0 <= oh < OH):
                    continue
                for dw in range(POOL_K):
                    ow = pw * POOL_S - POOL_P + dw
                    if not (0 <= ow < OW):
                        continue
                    acc += v1[:, :, oh, ow]
            out[:, :, ph, pw] = acc / float(POOL_K * POOL_K)
    return out


if __name__ == "__main__":
    key = jax.random.PRNGKey(0)
    kx, kw, kb = jax.random.split(key, 3)

    # Deterministic inputs / parameters (PyTorch-style uniform init bounds).
    x1 = jax.random.normal(kx, (N, 1, IH, IW), jnp.float32)
    bound = 1.0 / math.sqrt(1 * 3 * 3)
    weight = jax.random.uniform(kw, (1, C, 3, 3), jnp.float32, -bound, bound)
    bias = jax.random.uniform(kb, (C,), jnp.float32, -bound, bound)

    # Hoisted, weight-derived table (built once; inference-style).
    T = jax.block_until_ready(build_fused_table(weight, bias))

    out = model_forward_with_table(x1, T)
    out = jax.block_until_ready(out)

    ref = _reference_forward(x1, weight, bias)
    assert out.shape == (N, C, PH, PW), out.shape
    np.testing.assert_allclose(np.asarray(out), ref, rtol=1e-5, atol=1e-5)

    print("KERNEL_OK")
</pallas_src>

<mosaic_0001>
module attributes {stable_mosaic.version = 11 : i64} {
  func.func @_fused_kernel(%arg0: memref<8x16xf32, #tpu.memory_space<vmem>>, %arg1: memref<16x384xf32, #tpu.memory_space<vmem>>, %arg2: memref<8x384xf32, #tpu.memory_space<vmem>>) attributes {dimension_semantics = [], scalar_prefetch = 0 : i64, scratch_operands = 0 : i64, tpu.core_type = #tpu.core_type<tc>} {
    %c0 = arith.constant 0 : index
    %c0_0 = arith.constant 0 : index
    %0 = vector.load %arg0[%c0, %c0_0] : memref<8x16xf32, #tpu.memory_space<vmem>>, vector<8x16xf32>
    %c0_1 = arith.constant 0 : index
    %c0_2 = arith.constant 0 : index
    %1 = vector.load %arg1[%c0_1, %c0_2] : memref<16x384xf32, #tpu.memory_space<vmem>>, vector<16x384xf32>
    %cst = arith.constant dense<0.000000e+00> : vector<8x384xf32>
    %2 = tpu.matmul %0, %1, %cst {dimension_numbers = #tpu.dot_dimension_numbers<[1], [0], [0], [1], [0, 0, 1, 1], [], []>} : vector<8x16xf32>, vector<16x384xf32>, vector<8x384xf32> -> vector<8x384xf32>
    %c0_3 = arith.constant 0 : index
    %c0_4 = arith.constant 0 : index
    %3 = vector.load %arg2[%c0_3, %c0_4] : memref<8x384xf32, #tpu.memory_space<vmem>>, vector<8x384xf32>
    tpu.vector_store %arg2[%c0_3, %c0_4], %2 {strides = array<i32>} : memref<8x384xf32, #tpu.memory_space<vmem>>, vector<8x384xf32>,
    return
  }
}

</mosaic_0001>

<llo_original>
// kernel: model_forward_with_table.1
$region0: #{model_forward_with_table.1}
  #allocation0 [shape = 'u32[]', space=smem, size = 0x4, offset = 0x4, fixed_abs, tag = 'smem constant byte address 0x4 - core index']
  #allocation1 [shape = 'u32[144,128]{1,0:T(1,128)}', space=vmem, size = 0x12000, scoped, tag = 'internal scratch']
  %s0 = inlined_call_operand.vmem [shape: f32[8,16], index: 0, kind: input, shape index: {}]
  %s1 = inlined_call_operand.hbm [shape: f32[16,384], index: 1, kind: input, shape index: {}]
  %s2 = inlined_call_operand.vmem [shape: f32[8,384], index: 2, kind: output, shape index: {}]
  %s3 = sld [smem:[#allocation0]]
  $region22: #{model_forward_with_table.1} parent=0
    _
  %s5 = ssub.s32 1, %s3
  %s6 = scalar_select 0, %s5, %s3
  $region1: #{model_forward_with_table.1} parent=0
    #allocation2 [shape = 'u8[24576]{0}', space=vmem, size = 0x6000, scoped, tag = 'input window, operand 1, single buffered']
    #allocation3 [shape = 's32[1]{0}', space=sflag, size = 0x4, scoped, tag = 'scoped memory for model_forward_with_table.1']
    %7 = vsyncpa [#allocation3], 0
    // Predicated region
    $region2: #{model_forward_with_table.1} parent=1 // pred_check
      _
    $region3: #{model_forward_with_table.1} parent=1 // pred_check_branch
      %9 = sbr.rel (0) target = $region5
    $region4: #{model_forward_with_table.1} parent=1 // pred_region
      _
    $region5: #{model_forward_with_table.1} parent=1 // pred_fallthru
      _
    // Predicated region
    $region6: #{model_forward_with_table.1} parent=1 // pred_check
      _
    $region7: #{model_forward_with_table.1} parent=1 // pred_check_branch
      %11 = sbr.rel (0) target = $region9
    $region8: #{model_forward_with_table.1} parent=1 // pred_region
      %s13 = ssub.s32 768, 768
      %14 = vsyncadd [#allocation3], %s13
      %s15 = sshll.u32 [#allocation2], 4
      %s16 = int_to_ptr.vmem [resolvable:$true] %s15
      %21 = dma.hbm_to_vmem [thread:$0]  %s1, 768, %s16, [#allocation3], 384, 384, 24
    $region9: #{model_forward_with_table.1} parent=1 // pred_fallthru
      _
    // Predicated region
    $region10: #{model_forward_with_table.1} parent=1 // pred_check
      _
    $region11: #{model_forward_with_table.1} parent=1 // pred_check_branch
      %23 = sbr.rel (0) target = $region13
    $region12: #{model_forward_with_table.1} parent=1 // pred_region
      %24 = dma.done [#allocation3], 768
    $region13: #{model_forward_with_table.1} parent=1 // pred_fallthru
      _
    %v25 = vld [vmem:[%s0] sm:$0xff]
    %v26 = vld [vmem:[#allocation2] sm:$0xff]
    %v27 = vld [vmem:[#allocation2 + $0x8] sm:$0xff]
    %v28 = vld [vmem:[#allocation2 + $0x10] sm:$0xff]
    %v29 = vld [vmem:[#allocation2 + $0x18] sm:$0xff]
    %v30 = vld [vmem:[#allocation2 + $0x20] sm:$0xff]
    %v31 = vld [vmem:[#allocation2 + $0x28] sm:$0xff]
    %vm32 = vcmask 130048
    %v34 = vsel %vm32, %v25, 0
    %36 = vmatprep.subr.mxu0 %v27
    %37 = vmatpush1.msra.mxu0 %v26
    %38 = vmatprep.subr.mxu0 %v30
    %39 = vmatpush1.msra.mxu0 %v29
    %40 = vmatprep.subr.mxu0 0.0
    %41 = vmatpush1.msra.mxu0 0.0
    %42 = vmatprep.subr.mxu0 0.0
    %43 = vmatpush1.msra.mxu0 0.0
    %44 = vmatprep.subr.mxu0 0.0
    %45 = vmatpush1.msra.mxu0 0.0
    %46 = vmatprep.subr.mxu0 0.0
    %47 = vmatpush1.msra.mxu0 0.0
    %48 = vmatprep.subr.mxu0 0.0
    %49 = vmatpush1.msra.mxu0 0.0
    %50 = vmatprep.subr.mxu0 0.0
    %51 = vmatpush1.msra.mxu0 0.0
    %52 = vmatprep.subr.mxu0 0.0
    %53 = vmatpush1.msra.mxu0 0.0
    %54 = vmatprep.subr.mxu0 0.0
    %55 = vmatpush1.msra.mxu0 0.0
    %56 = vmatprep.subr.mxu0 0.0
    %57 = vmatpush1.msra.mxu0 0.0
    %58 = vmatprep.subr.mxu0 0.0
    %59 = vmatpush1.msra.mxu0 0.0
    %60 = vmatprep.subr.mxu0 0.0
    %61 = vmatpush1.msra.mxu0 0.0
    %62 = vmatprep.subr.mxu0 0.0
    %63 = vmatpush1.msra.mxu0 0.0
    %64 = vmatprep.subr.mxu0 0.0
    %65 = vmatpush1.msra.mxu0 0.0
    %66 = vmatprep.subr.mxu0 0.0
    %67 = vmatpush1.msra.mxu0 0.0
    %68 = vmatprep.subr.mxu0 0.0
    %69 = vmatpush1.msra.mxu0 0.0
    %70 = vmatprep.subr.mxu0 0.0
    %71 = vmatpush1.msra.mxu0 0.0
    %72 = vmatprep.subr.mxu0 0.0
    %73 = vmatpush1.msra.mxu0 0.0
    %74 = vmatprep.subr.mxu0 0.0
    %75 = vmatpush1.msra.mxu0 0.0
    %76 = vmatprep.subr.mxu0 0.0
    %77 = vmatpush1.msra.mxu0 0.0
    %78 = vmatprep.subr.mxu0 0.0
    %79 = vmatpush1.msra.mxu0 0.0
    %80 = vmatprep.subr.mxu0 0.0
    %81 = vmatpush1.msra.mxu0 0.0
    %82 = vmatprep.subr.mxu0 0.0
    %83 = vmatpush1.msra.mxu0 0.0
    %84 = vmatprep.subr.mxu0 0.0
    %85 = vmatpush1.msra.mxu0 0.0
    %86 = vmatprep.subr.mxu0 0.0
    %87 = vmatpush1.msra.mxu0 0.0
    %88 = vmatprep.subr.mxu0 0.0
    %89 = vmatpush1.msra.mxu0 0.0
    %90 = vmatprep.subr.mxu0 0.0
    %91 = vmatpush1.msra.mxu0 0.0
    %92 = vmatprep.subr.mxu0 0.0
    %93 = vmatpush1.msra.mxu0 0.0
    %94 = vmatprep.subr.mxu0 0.0
    %95 = vmatpush1.msra.mxu0 0.0
    %96 = vmatprep.subr.mxu0 0.0
    %97 = vmatpush1.msra.mxu0 0.0
    %98 = vmatprep.subr.mxu0 0.0
    %99 = vmatpush1.msra.mxu0 0.0
    %100 = vmatprep.mubr.f32.mxu0 0.0
    %101 = vmatmul.mubr.f32.gmra.mrb[0].mxu0 %v34
    %v102 = vpop.f32.mrb[0].mxu0
    %v103 = vadd.f32 0.0, %v102
    %v104 = vpop.f32.mrb[0].mxu0
    %v105 = vadd.f32 0.0, %v104
    %106 = vdwg.mxu0
    %107 = vmatprep.subr.mxu0 0.0
    %108 = vmatpush1.msra.mxu0 %v28
    %109 = vmatprep.subr.mxu0 0.0
    %110 = vmatpush1.msra.mxu0 %v31
    %111 = vmatprep.subr.mxu0 0.0
    %112 = vmatpush1.msra.mxu0 0.0
    %113 = vmatprep.subr.mxu0 0.0
    %114 = vmatpush1.msra.mxu0 0.0
    %115 = vmatprep.subr.mxu0 0.0
    %116 = vmatpush1.msra.mxu0 0.0
    %117 = vmatprep.subr.mxu0 0.0
    %118 = vmatpush1.msra.mxu0 0.0
    %119 = vmatprep.subr.mxu0 0.0
    %120 = vmatpush1.msra.mxu0 0.0
    %121 = vmatprep.subr.mxu0 0.0
    %122 = vmatpush1.msra.mxu0 0.0
    %123 = vmatprep.subr.mxu0 0.0
    %124 = vmatpush1.msra.mxu0 0.0
    %125 = vmatprep.subr.mxu0 0.0
    %126 = vmatpush1.msra.mxu0 0.0
    %127 = vmatprep.subr.mxu0 0.0
    %128 = vmatpush1.msra.mxu0 0.0
    %129 = vmatprep.subr.mxu0 0.0
    %130 = vmatpush1.msra.mxu0 0.0
    %131 = vmatprep.subr.mxu0 0.0
    %132 = vmatpush1.msra.mxu0 0.0
    %133 = vmatprep.subr.mxu0 0.0
    %134 = vmatpush1.msra.mxu0 0.0
    %135 = vmatprep.subr.mxu0 0.0
    %136 = vmatpush1.msra.mxu0 0.0
    %137 = vmatprep.subr.mxu0 0.0
    %138 = vmatpush1.msra.mxu0 0.0
    %139 = vmatprep.subr.mxu0 0.0
    %140 = vmatpush1.msra.mxu0 0.0
    %141 = vmatprep.subr.mxu0 0.0
    %142 = vmatpush1.msra.mxu0 0.0
    %143 = vmatprep.subr.mxu0 0.0
    %144 = vmatpush1.msra.mxu0 0.0
    %145 = vmatprep.subr.mxu0 0.0
    %146 = vmatpush1.msra.mxu0 0.0
    %147 = vmatprep.subr.mxu0 0.0
    %148 = vmatpush1.msra.mxu0 0.0
    %149 = vmatprep.subr.mxu0 0.0
    %150 = vmatpush1.msra.mxu0 0.0
    %151 = vmatprep.subr.mxu0 0.0
    %152 = vmatpush1.msra.mxu0 0.0
    %153 = vmatprep.subr.mxu0 0.0
    %154 = vmatpush1.msra.mxu0 0.0
    %155 = vmatprep.subr.mxu0 0.0
    %156 = vmatpush1.msra.mxu0 0.0
    %157 = vmatprep.subr.mxu0 0.0
    %158 = vmatpush1.msra.mxu0 0.0
    %159 = vmatprep.subr.mxu0 0.0
    %160 = vmatpush1.msra.mxu0 0.0
    %161 = vmatprep.subr.mxu0 0.0
    %162 = vmatpush1.msra.mxu0 0.0
    %163 = vmatprep.subr.mxu0 0.0
    %164 = vmatpush1.msra.mxu0 0.0
    %165 = vmatprep.subr.mxu0 0.0
    %166 = vmatpush1.msra.mxu0 0.0
    %167 = vmatprep.subr.mxu0 0.0
    %168 = vmatpush1.msra.mxu0 0.0
    %169 = vmatprep.subr.mxu0 0.0
    %170 = vmatpush1.msra.mxu0 0.0
    %171 = vmatprep.mubr.f32.mxu0 0.0
    %172 = vmatmul.mubr.f32.gmra.mrb[0].mxu0 %v34
    %v173 = vpop.f32.mrb[0].mxu0
    %v174 = vadd.f32 0.0, %v173
    %v175 = vpop.f32.mrb[0].mxu0
    %176 = vdwg.mxu0
    %177 = vst [vmem:[%s2] sm:$0xff] %v103
    %178 = vst [vmem:[%s2 + $0x8] sm:$0xff] %v105
    %179 = vst [vmem:[%s2 + $0x10] sm:$0xff] %v174
    // Predicated region
    $region14: #{model_forward_with_table.1} parent=1 // pred_check
      _
    $region15: #{model_forward_with_table.1} parent=1 // pred_check_branch
      %181 = sbr.rel (0) target = $region17
    $region16: #{model_forward_with_table.1} parent=1 // pred_region
      _
    $region17: #{model_forward_with_table.1} parent=1 // pred_fallthru
      _
    // Predicated region
    $region18: #{model_forward_with_table.1} parent=1 // pred_check
      _
    $region19: #{model_forward_with_table.1} parent=1 // pred_check_branch
      %183 = sbr.rel (0) target = $region21
    $region20: #{model_forward_with_table.1} parent=1 // pred_region
      _
    $region21: #{model_forward_with_table.1} parent=1 // pred_fallthru
      _
    %184 = vsyncpa [#allocation3], 1

</llo_original>
